<compile_context>
chip_gen: v7x
topology: tpu7x:2x2x1
jax: 0.10.0
libtpu: 0.0.40
codegen_flags: <defaults>
</compile_context>

<pallas_src>
import functools

import jax
import jax.numpy as jnp
from jax.experimental import pallas as pl
from jax.experimental.pallas import tpu as pltpu

LANE = 128
SUBLANE = 8


def _round_up(n, m):
    return ((n + m - 1) // m) * m


def _keep_mask(shape, *, seed, layer_idx, tile_idx, tile_rows):
    """Bernoulli(0.5) keep mask from a counter hash (murmur3 fmix32 finalizer).

    Only plain jnp integer ops (iota / xor / shift / mul) — lowers on Mosaic TPU
    and in the Pallas interpreter.  Keyed on the global (row, col) element index
    plus (seed, layer), so masks are independent across layers and batch tiles.
    """
    rows = jax.lax.broadcasted_iota(jnp.uint32, shape, 0)
    cols = jax.lax.broadcasted_iota(jnp.uint32, shape, 1)
    g_rows = rows + (tile_idx * tile_rows).astype(jnp.uint32)
    key = g_rows * jnp.uint32(shape[1]) + cols
    key = key ^ jnp.uint32((seed * 0x9E3779B9) & 0xFFFFFFFF)
    key = key ^ jnp.uint32(((layer_idx + 1) * 0x85EBCA6B) & 0xFFFFFFFF)
    key = key ^ (key >> jnp.uint32(16))
    key = key * jnp.uint32(0x85EBCA6B)
    key = key ^ (key >> jnp.uint32(13))
    key = key * jnp.uint32(0xC2B2AE35)
    key = key ^ (key >> jnp.uint32(16))
    return (key >> jnp.uint32(31)) == jnp.uint32(0)  # P(keep) = 0.5


def fused_mlp_kernel(*refs, n_layers, seed, tile_rows):
    """Whole MLP forward for one batch tile.

    refs = (x_ref, w0_ref, b0_ref, w1_ref, b1_ref, ..., o_ref); all feature dims
    pre-padded to 128 lanes, dropout scale already folded into hidden W/b.
    """
    x_ref = refs[0]
    o_ref = refs[-1]
    wb = refs[1:-1]
    tile_idx = pl.program_id(0)

    h = x_ref[...]
    for li in range(n_layers):
        w_ref = wb[2 * li]
        b_ref = wb[2 * li + 1]
        z = jnp.dot(h, w_ref[...], preferred_element_type=jnp.float32) + b_ref[...]
        if li < n_layers - 1:
            keep = _keep_mask(z.shape, seed=seed, layer_idx=li,
                              tile_idx=tile_idx, tile_rows=tile_rows)
            # dropout + ReLU fused into one select (scale 2.0 folded into W/b).
            z = jnp.where(keep & (z > 0.0), z, 0.0)
        h = z
    o_ref[...] = h.astype(o_ref.dtype)


def mlp_drop_forward(x, params, seed=0, *, batch_tile=None):
    """Fused Pallas forward pass: pads to lane-dense shapes, runs one pallas_call."""
    n_layers = len(params)
    B, d_in = x.shape
    sizes = [d_in] + [w.shape[1] for (w, _) in params]
    d_pad = [_round_up(d, LANE) for d in sizes]

    bp = _round_up(B, SUBLANE)
    if batch_tile is None:
        batch_tile = min(bp, 256)
    batch_tile = _round_up(batch_tile, SUBLANE)
    bp = _round_up(bp, batch_tile)
    grid = (bp // batch_tile,)

    x_p = jnp.pad(x.astype(jnp.float32), ((0, bp - B), (0, d_pad[0] - d_in)))

    flat_inputs = [x_p]
    in_specs = [pl.BlockSpec((batch_tile, d_pad[0]), lambda i: (i, 0))]
    for li, (w, b) in enumerate(params):
        di, do = w.shape
        # Fold dropout scale 1/keep_prob = 2.0 into hidden-layer weights/bias.
        scale = 2.0 if li < n_layers - 1 else 1.0
        w_p = jnp.pad(w.astype(jnp.float32) * scale,
                      ((0, d_pad[li] - di), (0, d_pad[li + 1] - do)))
        b_p = jnp.pad(jnp.reshape(b.astype(jnp.float32), (1, do)) * scale,
                      ((0, 0), (0, d_pad[li + 1] - do)))
        flat_inputs += [w_p, b_p]
        in_specs += [
            pl.BlockSpec((d_pad[li], d_pad[li + 1]), lambda i: (0, 0)),  # W resident
            pl.BlockSpec((1, d_pad[li + 1]), lambda i: (0, 0)),          # b resident
        ]

    kernel = functools.partial(fused_mlp_kernel, n_layers=n_layers,
                               seed=int(seed), tile_rows=batch_tile)
    out_p = pl.pallas_call(
        kernel,
        out_shape=jax.ShapeDtypeStruct((bp, d_pad[-1]), jnp.float32),
        grid=grid,
        in_specs=in_specs,
        out_specs=pl.BlockSpec((batch_tile, d_pad[-1]), lambda i: (i, 0)),
        compiler_params=pltpu.CompilerParams(
            dimension_semantics=("parallel",),
        ),
    )(*flat_inputs)
    return out_p[:B, :sizes[-1]]


def init_mlp_params(key, sizes):
    """Xavier-uniform weights (stored transposed as (D_in, D_out)), zero biases."""
    params = []
    for d_in, d_out in zip(sizes[:-1], sizes[1:]):
        key, sub = jax.random.split(key)
        bound = (6.0 / (d_in + d_out)) ** 0.5
        w = jax.random.uniform(sub, (d_in, d_out), jnp.float32, -bound, bound)
        b = jnp.zeros((d_out,), jnp.float32)
        params.append((w, b))
    return params


if __name__ == "__main__":
    # Small shapes consistent with the module: batch=8, input=32, hidden=[64, 64], out=16.
    input_size = 32
    hidden_layers = [64, 64]
    out_size = 16
    batch = 8

    sizes = [input_size] + hidden_layers + [out_size]

    key = jax.random.PRNGKey(0)
    key_x, key_p = jax.random.split(key)
    x = jax.random.normal(key_x, (batch, input_size), jnp.float32)
    params = init_mlp_params(key_p, sizes)

    out = mlp_drop_forward(x, params, seed=1234)
    out = jax.block_until_ready(out)
    assert out.shape == (batch, out_size), out.shape
    assert out.dtype == jnp.float32
    print("KERNEL_OK")
</pallas_src>

<mosaic_0001>
module attributes {stable_mosaic.version = 11 : i64} {
  func.func @fused_mlp_kernel(%arg0: i32, %arg1: memref<8x128xf32, #tpu.memory_space<vmem>>, %arg2: memref<128x128xf32, #tpu.memory_space<vmem>>, %arg3: memref<1x128xf32, #tpu.memory_space<vmem>>, %arg4: memref<128x128xf32, #tpu.memory_space<vmem>>, %arg5: memref<1x128xf32, #tpu.memory_space<vmem>>, %arg6: memref<128x128xf32, #tpu.memory_space<vmem>>, %arg7: memref<1x128xf32, #tpu.memory_space<vmem>>, %arg8: memref<8x128xf32, #tpu.memory_space<vmem>>) attributes {dimension_semantics = [#tpu.dimension_semantics<parallel>], iteration_bounds = array<i64: 1>, scalar_prefetch = 0 : i64, scratch_operands = 0 : i64, tpu.core_type = #tpu.core_type<tc>, window_params = [{transform_indices = @transform_0, window_bounds = array<i64: 8, 128>}, {pipeline_mode = #tpu.pipeline_mode<synchronous>, transform_indices = @transform_1, window_bounds = array<i64: 128, 128>}, {pipeline_mode = #tpu.pipeline_mode<synchronous>, transform_indices = @transform_2, window_bounds = array<i64: 1, 128>}, {pipeline_mode = #tpu.pipeline_mode<synchronous>, transform_indices = @transform_3, window_bounds = array<i64: 128, 128>}, {pipeline_mode = #tpu.pipeline_mode<synchronous>, transform_indices = @transform_4, window_bounds = array<i64: 1, 128>}, {pipeline_mode = #tpu.pipeline_mode<synchronous>, transform_indices = @transform_5, window_bounds = array<i64: 128, 128>}, {pipeline_mode = #tpu.pipeline_mode<synchronous>, transform_indices = @transform_6, window_bounds = array<i64: 1, 128>}, {transform_indices = @transform_7, window_bounds = array<i64: 8, 128>}]} {
    %c0 = arith.constant 0 : index
    %c0_0 = arith.constant 0 : index
    %0 = vector.load %arg1[%c0, %c0_0] : memref<8x128xf32, #tpu.memory_space<vmem>>, vector<8x128xf32>
    %c0_1 = arith.constant 0 : index
    %c0_2 = arith.constant 0 : index
    %1 = vector.load %arg2[%c0_1, %c0_2] : memref<128x128xf32, #tpu.memory_space<vmem>>, vector<128x128xf32>
    %cst = arith.constant dense<0.000000e+00> : vector<8x128xf32>
    %2 = tpu.matmul %0, %1, %cst {dimension_numbers = #tpu.dot_dimension_numbers<[1], [0], [0], [1], [0, 0, 1, 1], [], []>} : vector<8x128xf32>, vector<128x128xf32>, vector<8x128xf32> -> vector<8x128xf32>
    %c0_3 = arith.constant 0 : index
    %c0_4 = arith.constant 0 : index
    %3 = vector.load %arg3[%c0_3, %c0_4] : memref<1x128xf32, #tpu.memory_space<vmem>>, vector<1x128xf32>
    %4 = vector.broadcast %3 : vector<1x128xf32> to vector<8x128xf32>
    %5 = arith.addf %2, %4 : vector<8x128xf32>
    %6 = tpu.iota {dimensions = array<i32: 0>} : vector<8x128xi32>
    %7 = tpu.iota {dimensions = array<i32: 1>} : vector<8x128xi32>
    %c8_i32 = arith.constant 8 : i32
    %8 = arith.muli %arg0, %c8_i32 : i32
    %9 = vector.broadcast %8 : i32 to vector<8x128xi32>
    %10 = arith.addi %6, %9 : vector<8x128xi32>
    %c128_i32 = arith.constant 128 : i32
    %11 = vector.broadcast %c128_i32 : i32 to vector<8x128xi32>
    %12 = arith.muli %10, %11 : vector<8x128xi32>
    %13 = arith.addi %12, %7 : vector<8x128xi32>
    %c-1486307902_i32 = arith.constant -1486307902 : i32
    %14 = vector.broadcast %c-1486307902_i32 : i32 to vector<8x128xi32>
    %15 = arith.xori %13, %14 : vector<8x128xi32>
    %c-2048144789_i32 = arith.constant -2048144789 : i32
    %16 = vector.broadcast %c-2048144789_i32 : i32 to vector<8x128xi32>
    %17 = arith.xori %15, %16 : vector<8x128xi32>
    %c16_i32 = arith.constant 16 : i32
    %18 = vector.broadcast %c16_i32 : i32 to vector<8x128xi32>
    %19 = arith.shrui %17, %18 : vector<8x128xi32>
    %20 = arith.xori %17, %19 : vector<8x128xi32>
    %c-2048144789_i32_5 = arith.constant -2048144789 : i32
    %21 = vector.broadcast %c-2048144789_i32_5 : i32 to vector<8x128xi32>
    %22 = arith.muli %20, %21 : vector<8x128xi32>
    %c13_i32 = arith.constant 13 : i32
    %23 = vector.broadcast %c13_i32 : i32 to vector<8x128xi32>
    %24 = arith.shrui %22, %23 : vector<8x128xi32>
    %25 = arith.xori %22, %24 : vector<8x128xi32>
    %c-1028477387_i32 = arith.constant -1028477387 : i32
    %26 = vector.broadcast %c-1028477387_i32 : i32 to vector<8x128xi32>
    %27 = arith.muli %25, %26 : vector<8x128xi32>
    %c16_i32_6 = arith.constant 16 : i32
    %28 = vector.broadcast %c16_i32_6 : i32 to vector<8x128xi32>
    %29 = arith.shrui %27, %28 : vector<8x128xi32>
    %30 = arith.xori %27, %29 : vector<8x128xi32>
    %c31_i32 = arith.constant 31 : i32
    %31 = vector.broadcast %c31_i32 : i32 to vector<8x128xi32>
    %32 = arith.shrui %30, %31 : vector<8x128xi32>
    %c0_i32 = arith.constant 0 : i32
    %33 = vector.broadcast %c0_i32 : i32 to vector<8x128xi32>
    %34 = arith.cmpi eq, %32, %33 : vector<8x128xi32>
    %cst_7 = arith.constant 0.000000e+00 : f32
    %35 = vector.broadcast %cst_7 : f32 to vector<8x128xf32>
    %36 = arith.cmpf ogt, %5, %35 : vector<8x128xf32>
    %37 = arith.andi %34, %36 : vector<8x128xi1>
    %cst_8 = arith.constant 0.000000e+00 : f32
    %38 = vector.broadcast %cst_8 : f32 to vector<8x128xf32>
    %39 = arith.select %37, %5, %38 : vector<8x128xi1>, vector<8x128xf32>
    %c0_9 = arith.constant 0 : index
    %c0_10 = arith.constant 0 : index
    %40 = vector.load %arg4[%c0_9, %c0_10] : memref<128x128xf32, #tpu.memory_space<vmem>>, vector<128x128xf32>
    %cst_11 = arith.constant dense<0.000000e+00> : vector<8x128xf32>
    %41 = tpu.matmul %39, %40, %cst_11 {dimension_numbers = #tpu.dot_dimension_numbers<[1], [0], [0], [1], [0, 0, 1, 1], [], []>} : vector<8x128xf32>, vector<128x128xf32>, vector<8x128xf32> -> vector<8x128xf32>
    %c0_12 = arith.constant 0 : index
    %c0_13 = arith.constant 0 : index
    %42 = vector.load %arg5[%c0_12, %c0_13] : memref<1x128xf32, #tpu.memory_space<vmem>>, vector<1x128xf32>
    %43 = vector.broadcast %42 : vector<1x128xf32> to vector<8x128xf32>
    %44 = arith.addf %41, %43 : vector<8x128xf32>
    %45 = tpu.iota {dimensions = array<i32: 0>} : vector<8x128xi32>
    %46 = tpu.iota {dimensions = array<i32: 1>} : vector<8x128xi32>
    %c8_i32_14 = arith.constant 8 : i32
    %47 = arith.muli %arg0, %c8_i32_14 : i32
    %48 = vector.broadcast %47 : i32 to vector<8x128xi32>
    %49 = arith.addi %45, %48 : vector<8x128xi32>
    %c128_i32_15 = arith.constant 128 : i32
    %50 = vector.broadcast %c128_i32_15 : i32 to vector<8x128xi32>
    %51 = arith.muli %49, %50 : vector<8x128xi32>
    %52 = arith.addi %51, %46 : vector<8x128xi32>
    %c-1486307902_i32_16 = arith.constant -1486307902 : i32
    %53 = vector.broadcast %c-1486307902_i32_16 : i32 to vector<8x128xi32>
    %54 = arith.xori %52, %53 : vector<8x128xi32>
    %c198677718_i32 = arith.constant 198677718 : i32
    %55 = vector.broadcast %c198677718_i32 : i32 to vector<8x128xi32>
    %56 = arith.xori %54, %55 : vector<8x128xi32>
    %c16_i32_17 = arith.constant 16 : i32
    %57 = vector.broadcast %c16_i32_17 : i32 to vector<8x128xi32>
    %58 = arith.shrui %56, %57 : vector<8x128xi32>
    %59 = arith.xori %56, %58 : vector<8x128xi32>
    %c-2048144789_i32_18 = arith.constant -2048144789 : i32
    %60 = vector.broadcast %c-2048144789_i32_18 : i32 to vector<8x128xi32>
    %61 = arith.muli %59, %60 : vector<8x128xi32>
    %c13_i32_19 = arith.constant 13 : i32
    %62 = vector.broadcast %c13_i32_19 : i32 to vector<8x128xi32>
    %63 = arith.shrui %61, %62 : vector<8x128xi32>
    %64 = arith.xori %61, %63 : vector<8x128xi32>
    %c-1028477387_i32_20 = arith.constant -1028477387 : i32
    %65 = vector.broadcast %c-1028477387_i32_20 : i32 to vector<8x128xi32>
    %66 = arith.muli %64, %65 : vector<8x128xi32>
    %c16_i32_21 = arith.constant 16 : i32
    %67 = vector.broadcast %c16_i32_21 : i32 to vector<8x128xi32>
    %68 = arith.shrui %66, %67 : vector<8x128xi32>
    %69 = arith.xori %66, %68 : vector<8x128xi32>
    %c31_i32_22 = arith.constant 31 : i32
    %70 = vector.broadcast %c31_i32_22 : i32 to vector<8x128xi32>
    %71 = arith.shrui %69, %70 : vector<8x128xi32>
    %c0_i32_23 = arith.constant 0 : i32
    %72 = vector.broadcast %c0_i32_23 : i32 to vector<8x128xi32>
    %73 = arith.cmpi eq, %71, %72 : vector<8x128xi32>
    %cst_24 = arith.constant 0.000000e+00 : f32
    %74 = vector.broadcast %cst_24 : f32 to vector<8x128xf32>
    %75 = arith.cmpf ogt, %44, %74 : vector<8x128xf32>
    %76 = arith.andi %73, %75 : vector<8x128xi1>
    %cst_25 = arith.constant 0.000000e+00 : f32
    %77 = vector.broadcast %cst_25 : f32 to vector<8x128xf32>
    %78 = arith.select %76, %44, %77 : vector<8x128xi1>, vector<8x128xf32>
    %c0_26 = arith.constant 0 : index
    %c0_27 = arith.constant 0 : index
    %79 = vector.load %arg6[%c0_26, %c0_27] : memref<128x128xf32, #tpu.memory_space<vmem>>, vector<128x128xf32>
    %cst_28 = arith.constant dense<0.000000e+00> : vector<8x128xf32>
    %80 = tpu.matmul %78, %79, %cst_28 {dimension_numbers = #tpu.dot_dimension_numbers<[1], [0], [0], [1], [0, 0, 1, 1], [], []>} : vector<8x128xf32>, vector<128x128xf32>, vector<8x128xf32> -> vector<8x128xf32>
    %c0_29 = arith.constant 0 : index
    %c0_30 = arith.constant 0 : index
    %81 = vector.load %arg7[%c0_29, %c0_30] : memref<1x128xf32, #tpu.memory_space<vmem>>, vector<1x128xf32>
    %82 = vector.broadcast %81 : vector<1x128xf32> to vector<8x128xf32>
    %83 = arith.addf %80, %82 : vector<8x128xf32>
    %c0_31 = arith.constant 0 : index
    %c0_32 = arith.constant 0 : index
    %84 = vector.load %arg8[%c0_31, %c0_32] : memref<8x128xf32, #tpu.memory_space<vmem>>, vector<8x128xf32>
    tpu.vector_store %arg8[%c0_31, %c0_32], %83 {strides = array<i32>} : memref<8x128xf32, #tpu.memory_space<vmem>>, vector<8x128xf32>,
    return
  }
  func.func @transform_0(%arg0: i32) -> (i32, i32) {
    %c0_i32 = arith.constant 0 : i32
    %c0_i32_0 = arith.constant 0 : i32
    return %arg0, %c0_i32 : i32, i32
  }
  func.func @transform_1(%arg0: i32) -> (i32, i32) {
    %c0_i32 = arith.constant 0 : i32
    %c0_i32_0 = arith.constant 0 : i32
    %c0_i32_1 = arith.constant 0 : i32
    return %c0_i32, %c0_i32_0 : i32, i32
  }
  func.func @transform_2(%arg0: i32) -> (i32, i32) {
    %c0_i32 = arith.constant 0 : i32
    %c0_i32_0 = arith.constant 0 : i32
    %c0_i32_1 = arith.constant 0 : i32
    return %c0_i32, %c0_i32_0 : i32, i32
  }
  func.func @transform_3(%arg0: i32) -> (i32, i32) {
    %c0_i32 = arith.constant 0 : i32
    %c0_i32_0 = arith.constant 0 : i32
    %c0_i32_1 = arith.constant 0 : i32
    return %c0_i32, %c0_i32_0 : i32, i32
  }
  func.func @transform_4(%arg0: i32) -> (i32, i32) {
    %c0_i32 = arith.constant 0 : i32
    %c0_i32_0 = arith.constant 0 : i32
    %c0_i32_1 = arith.constant 0 : i32
    return %c0_i32, %c0_i32_0 : i32, i32
  }
  func.func @transform_5(%arg0: i32) -> (i32, i32) {
    %c0_i32 = arith.constant 0 : i32
    %c0_i32_0 = arith.constant 0 : i32
    %c0_i32_1 = arith.constant 0 : i32
    return %c0_i32, %c0_i32_0 : i32, i32
  }
  func.func @transform_6(%arg0: i32) -> (i32, i32) {
    %c0_i32 = arith.constant 0 : i32
    %c0_i32_0 = arith.constant 0 : i32
    %c0_i32_1 = arith.constant 0 : i32
    return %c0_i32, %c0_i32_0 : i32, i32
  }
  func.func @transform_7(%arg0: i32) -> (i32, i32) {
    %c0_i32 = arith.constant 0 : i32
    %c0_i32_0 = arith.constant 0 : i32
    return %arg0, %c0_i32 : i32, i32
  }
}

</mosaic_0001>

<llo_original>
// kernel: tpu_custom_call.1
$region0: #{tpu_custom_call.1}
  #allocation0 [shape = 'u32[]', space=smem, size = 0x4, offset = 0x4, fixed_abs, tag = 'smem constant byte address 0x4 - core index']
  #allocation1 [shape = 'u32[144,128]{1,0:T(1,128)}', space=vmem, size = 0x12000, scoped, tag = 'internal scratch']
  %s0 = inlined_call_operand.hbm [shape: f32[8,128], index: 0, kind: input, shape index: {}]
  %s1 = inlined_call_operand.hbm [shape: f32[128,128], index: 1, kind: input, shape index: {}]
  %s2 = inlined_call_operand.vmem [shape: f32[1,128], index: 2, kind: input, shape index: {}]
  %s3 = inlined_call_operand.hbm [shape: f32[128,128], index: 3, kind: input, shape index: {}]
  %s4 = inlined_call_operand.vmem [shape: f32[1,128], index: 4, kind: input, shape index: {}]
  %s5 = inlined_call_operand.hbm [shape: f32[128,128], index: 5, kind: input, shape index: {}]
  %s6 = inlined_call_operand.vmem [shape: f32[1,128], index: 6, kind: input, shape index: {}]
  %s7 = inlined_call_operand.hbm [shape: f32[8,128], index: 7, kind: output, shape index: {}]
  %s8 = sld [smem:[#allocation0]]
  $region54: #{tpu_custom_call.1} parent=0
    _
  %s10 = ssub.s32 1, %s8
  %s11 = scalar_select 0, %s10, %s8
  $region1: #{tpu_custom_call.1} parent=0
    #allocation2 [shape = 'u8[4096]{0}', space=vmem, size = 0x1000, scoped, tag = 'input window, operand 0, single buffered']
    #allocation3 [shape = 's32[1]{0}', space=sflag, size = 0x4, scoped, tag = 'scoped memory for tpu_custom_call.1']
    #allocation4 [shape = 's32[1]{0}', space=sflag, size = 0x4, scoped, tag = 'scoped memory for tpu_custom_call.1']
    #allocation5 [shape = 'u8[65536]{0}', space=vmem, size = 0x10000, scoped, tag = 'input window, operand 1, single buffered']
    #allocation6 [shape = 's32[1]{0}', space=sflag, size = 0x4, scoped, tag = 'scoped memory for tpu_custom_call.1']
    #allocation7 [shape = 'u8[65536]{0}', space=vmem, size = 0x10000, scoped, tag = 'input window, operand 3, single buffered']
    #allocation8 [shape = 'u8[65536]{0}', space=vmem, size = 0x10000, scoped, tag = 'input window, operand 5, single buffered']
    #allocation9 [shape = 's32[1]{0}', space=sflag, size = 0x4, scoped, tag = 'scoped memory for tpu_custom_call.1']
    #allocation10 [shape = 'u8[4096]{0}', space=vmem, size = 0x1000, scoped, tag = 'output window, operand 0, single buffered']
    %12 = vsyncpa [#allocation3], 0
    %13 = vsyncpa [#allocation6], 0
    %14 = vsyncpa [#allocation9], 0
    %15 = vsyncpa [#allocation4], 0
    // Predicated region
    $region2: #{tpu_custom_call.1} parent=1 // pred_check
      _
    $region3: #{tpu_custom_call.1} parent=1 // pred_check_branch
      %17 = sbr.rel (0) target = $region5
    $region4: #{tpu_custom_call.1} parent=1 // pred_region
      %s19 = ssub.s32 128, 128
      %20 = vsyncadd [#allocation3], %s19
      %s22 = sshll.u32 [#allocation2], 4
      %s23 = int_to_ptr.vmem [resolvable:$true] %s22
      %25 = dma.hbm_to_vmem [thread:$0]  %s0, 128, %s23, [#allocation3]
    $region5: #{tpu_custom_call.1} parent=1 // pred_fallthru
      _
    // Predicated region
    $region6: #{tpu_custom_call.1} parent=1 // pred_check
      _
    $region7: #{tpu_custom_call.1} parent=1 // pred_check_branch
      %27 = sbr.rel (0) target = $region9
    $region8: #{tpu_custom_call.1} parent=1 // pred_region
      %s29 = ssub.s32 2048, 2048
      %30 = vsyncadd [#allocation6], %s29
      %s31 = sshll.u32 [#allocation5], 4
      %s32 = int_to_ptr.vmem [resolvable:$true] %s31
      %37 = dma.hbm_to_vmem [thread:$0]  %s1, 2048, %s32, [#allocation6], 128, 128, 8
    $region9: #{tpu_custom_call.1} parent=1 // pred_fallthru
      _
    // Predicated region
    $region10: #{tpu_custom_call.1} parent=1 // pred_check
      _
    $region11: #{tpu_custom_call.1} parent=1 // pred_check_branch
      %39 = sbr.rel (0) target = $region13
    $region12: #{tpu_custom_call.1} parent=1 // pred_region
      _
    $region13: #{tpu_custom_call.1} parent=1 // pred_fallthru
      _
    // Predicated region
    $region14: #{tpu_custom_call.1} parent=1 // pred_check
      _
    $region15: #{tpu_custom_call.1} parent=1 // pred_check_branch
      %41 = sbr.rel (0) target = $region17
    $region16: #{tpu_custom_call.1} parent=1 // pred_region
      %s43 = ssub.s32 2048, 2048
      %44 = vsyncadd [#allocation6], %s43
      %s45 = sshll.u32 [#allocation7], 4
      %s46 = int_to_ptr.vmem [resolvable:$true] %s45
      %51 = dma.hbm_to_vmem [thread:$0]  %s3, 2048, %s46, [#allocation6], 128, 128, 8
    $region17: #{tpu_custom_call.1} parent=1 // pred_fallthru
      _
    // Predicated region
    $region18: #{tpu_custom_call.1} parent=1 // pred_check
      _
    $region19: #{tpu_custom_call.1} parent=1 // pred_check_branch
      %53 = sbr.rel (0) target = $region21
    $region20: #{tpu_custom_call.1} parent=1 // pred_region
      _
    $region21: #{tpu_custom_call.1} parent=1 // pred_fallthru
      _
    // Predicated region
    $region22: #{tpu_custom_call.1} parent=1 // pred_check
      _
    $region23: #{tpu_custom_call.1} parent=1 // pred_check_branch
      %55 = sbr.rel (0) target = $region25
    $region24: #{tpu_custom_call.1} parent=1 // pred_region
      %s57 = ssub.s32 2048, 2048
      %58 = vsyncadd [#allocation9], %s57
      %s59 = sshll.u32 [#allocation8], 4
      %s60 = int_to_ptr.vmem [resolvable:$true] %s59
      %65 = dma.hbm_to_vmem [thread:$0]  %s5, 2048, %s60, [#allocation9], 128, 128, 8
    $region25: #{tpu_custom_call.1} parent=1 // pred_fallthru
      _
    // Predicated region
    $region26: #{tpu_custom_call.1} parent=1 // pred_check
      _
    $region27: #{tpu_custom_call.1} parent=1 // pred_check_branch
      %67 = sbr.rel (0) target = $region29
    $region28: #{tpu_custom_call.1} parent=1 // pred_region
      _
    $region29: #{tpu_custom_call.1} parent=1 // pred_fallthru
      _
    // Predicated region
    $region30: #{tpu_custom_call.1} parent=1 // pred_check
      _
    $region31: #{tpu_custom_call.1} parent=1 // pred_check_branch
      %69 = sbr.rel (0) target = $region33
    $region32: #{tpu_custom_call.1} parent=1 // pred_region
      %70 = dma.done [#allocation3], 128
    $region33: #{tpu_custom_call.1} parent=1 // pred_fallthru
      _
    // Predicated region
    $region34: #{tpu_custom_call.1} parent=1 // pred_check
      _
    $region35: #{tpu_custom_call.1} parent=1 // pred_check_branch
      %72 = sbr.rel (0) target = $region37
    $region36: #{tpu_custom_call.1} parent=1 // pred_region
      %73 = dma.done [#allocation6], 2048
    $region37: #{tpu_custom_call.1} parent=1 // pred_fallthru
      _
    // Predicated region
    $region38: #{tpu_custom_call.1} parent=1 // pred_check
      _
    $region39: #{tpu_custom_call.1} parent=1 // pred_check_branch
      %75 = sbr.rel (0) target = $region41
    $region40: #{tpu_custom_call.1} parent=1 // pred_region
      %76 = dma.done [#allocation6], 2048
    $region41: #{tpu_custom_call.1} parent=1 // pred_fallthru
      _
    // Predicated region
    $region42: #{tpu_custom_call.1} parent=1 // pred_check
      _
    $region43: #{tpu_custom_call.1} parent=1 // pred_check_branch
      %78 = sbr.rel (0) target = $region45
    $region44: #{tpu_custom_call.1} parent=1 // pred_region
      %79 = dma.done [#allocation9], 2048
    $region45: #{tpu_custom_call.1} parent=1 // pred_fallthru
      _
    %v80 = vld [vmem:[#allocation2] sm:$0xff]
    %v81 = vld [vmem:[#allocation5] sm:$0xff]
    %v82 = vld [vmem:[#allocation5 + $0x8] sm:$0xff]
    %v83 = vld [vmem:[#allocation5 + $0x10] sm:$0xff]
    %v84 = vld [vmem:[#allocation5 + $0x18] sm:$0xff]
    %v85 = vld [vmem:[#allocation5 + $0x20] sm:$0xff]
    %v86 = vld [vmem:[#allocation5 + $0x28] sm:$0xff]
    %v87 = vld [vmem:[#allocation5 + $0x30] sm:$0xff]
    %v88 = vld [vmem:[#allocation5 + $0x38] sm:$0xff]
    %v89 = vld [vmem:[#allocation5 + $0x40] sm:$0xff]
    %v90 = vld [vmem:[#allocation5 + $0x48] sm:$0xff]
    %v91 = vld [vmem:[#allocation5 + $0x50] sm:$0xff]
    %v92 = vld [vmem:[#allocation5 + $0x58] sm:$0xff]
    %v93 = vld [vmem:[#allocation5 + $0x60] sm:$0xff]
    %v94 = vld [vmem:[#allocation5 + $0x68] sm:$0xff]
    %v95 = vld [vmem:[#allocation5 + $0x70] sm:$0xff]
    %v96 = vld [vmem:[#allocation5 + $0x78] sm:$0xff]
    %v97 = vld [vmem:[%s2] sm:$0x1]
    %v99 = vlaneseq
    %v100 = vshrl.u32 %v99, 7
    %v101 = vsub.s32 0, %v100
    %v102 = vrot.slane %v97, %v101
    %104 = vmatprep.subr.mxu0 0.0
    %105 = vmatpush1.msra.mxu0 %v81
    %106 = vmatprep.subr.mxu0 0.0
    %107 = vmatpush1.msra.mxu0 %v82
    %108 = vmatprep.subr.mxu0 0.0
    %109 = vmatpush1.msra.mxu0 %v83
    %110 = vmatprep.subr.mxu0 0.0
    %111 = vmatpush1.msra.mxu0 %v84
    %112 = vmatprep.subr.mxu0 0.0
    %113 = vmatpush1.msra.mxu0 %v85
    %114 = vmatprep.subr.mxu0 0.0
    %115 = vmatpush1.msra.mxu0 %v86
    %116 = vmatprep.subr.mxu0 0.0
    %117 = vmatpush1.msra.mxu0 %v87
    %118 = vmatprep.subr.mxu0 0.0
    %119 = vmatpush1.msra.mxu0 %v88
    %120 = vmatprep.subr.mxu0 0.0
    %121 = vmatpush1.msra.mxu0 %v89
    %122 = vmatprep.subr.mxu0 0.0
    %123 = vmatpush1.msra.mxu0 %v90
    %124 = vmatprep.subr.mxu0 0.0
    %125 = vmatpush1.msra.mxu0 %v91
    %126 = vmatprep.subr.mxu0 0.0
    %127 = vmatpush1.msra.mxu0 %v92
    %128 = vmatprep.subr.mxu0 0.0
    %129 = vmatpush1.msra.mxu0 %v93
    %130 = vmatprep.subr.mxu0 0.0
    %131 = vmatpush1.msra.mxu0 %v94
    %132 = vmatprep.subr.mxu0 0.0
    %133 = vmatpush1.msra.mxu0 %v95
    %134 = vmatprep.subr.mxu0 0.0
    %135 = vmatpush1.msra.mxu0 %v96
    %136 = vmatprep.subr.mxu0 0.0
    %137 = vmatpush1.msra.mxu0 0.0
    %138 = vmatprep.subr.mxu0 0.0
    %139 = vmatpush1.msra.mxu0 0.0
    %140 = vmatprep.subr.mxu0 0.0
    %141 = vmatpush1.msra.mxu0 0.0
    %142 = vmatprep.subr.mxu0 0.0
    %143 = vmatpush1.msra.mxu0 0.0
    %144 = vmatprep.subr.mxu0 0.0
    %145 = vmatpush1.msra.mxu0 0.0
    %146 = vmatprep.subr.mxu0 0.0
    %147 = vmatpush1.msra.mxu0 0.0
    %148 = vmatprep.subr.mxu0 0.0
    %149 = vmatpush1.msra.mxu0 0.0
    %150 = vmatprep.subr.mxu0 0.0
    %151 = vmatpush1.msra.mxu0 0.0
    %152 = vmatprep.subr.mxu0 0.0
    %153 = vmatpush1.msra.mxu0 0.0
    %154 = vmatprep.subr.mxu0 0.0
    %155 = vmatpush1.msra.mxu0 0.0
    %156 = vmatprep.subr.mxu0 0.0
    %157 = vmatpush1.msra.mxu0 0.0
    %158 = vmatprep.subr.mxu0 0.0
    %159 = vmatpush1.msra.mxu0 0.0
    %160 = vmatprep.subr.mxu0 0.0
    %161 = vmatpush1.msra.mxu0 0.0
    %162 = vmatprep.subr.mxu0 0.0
    %163 = vmatpush1.msra.mxu0 0.0
    %164 = vmatprep.subr.mxu0 0.0
    %165 = vmatpush1.msra.mxu0 0.0
    %166 = vmatprep.subr.mxu0 0.0
    %167 = vmatpush1.msra.mxu0 0.0
    %168 = vmatprep.mubr.f32.mxu0 0.0
    %169 = vmatmul.mubr.f32.gmra.mrb[0].mxu0 %v80
    %v170 = vpop.f32.mrb[0].mxu0
    %v171 = vadd.f32 %v102, %v170
    %v172 = vpop.f32.mrb[0].mxu0
    %173 = vdwg.mxu0
    %v174 = vlaneseq
    %v175 = vshrl.u32 %v174, 7
    %v176 = vlaneseq
    %v177 = vand.u32 %v176, 127
    %s178 = smul.u32 0, 8
    %v179 = vstv %s178
    %v180 = vadd.s32 %v175, %v179
    %v181 = vmul.u32 %v180, 128
    %v182 = vadd.s32 %v181, %v177
    %v183 = vxor.u32 %v182, 2808659394
    %v184 = vxor.u32 %v183, 2246822507
    %v185 = vshrl.u32 %v184, 16
    %v186 = vxor.u32 %v184, %v185
    %v187 = vmul.u32 %v186, 2246822507
    %v188 = vshrl.u32 %v187, 13
    %v189 = vxor.u32 %v187, %v188
    %v190 = vmul.u32 %v189, 3266489909
    %v191 = vshrl.u32 %v190, 16
    %v192 = vxor.u32 %v190, %v191
    %v193 = vshrl.u32 %v192, 31
    %vm194 = vcmp.eq.s32.totalorder %v193, 0
    %vm195 = vcmp.gt.f32.partialorder %v171, 0.0
    %vm196 = vmand %vm194, %vm195
    %v197 = vsel %vm196, %v171, 0.0
    %v198 = vld [vmem:[#allocation7] sm:$0xff]
    %v199 = vld [vmem:[#allocation7 + $0x8] sm:$0xff]
    %v200 = vld [vmem:[#allocation7 + $0x10] sm:$0xff]
    %v201 = vld [vmem:[#allocation7 + $0x18] sm:$0xff]
    %v202 = vld [vmem:[#allocation7 + $0x20] sm:$0xff]
    %v203 = vld [vmem:[#allocation7 + $0x28] sm:$0xff]
    %v204 = vld [vmem:[#allocation7 + $0x30] sm:$0xff]
    %v205 = vld [vmem:[#allocation7 + $0x38] sm:$0xff]
    %v206 = vld [vmem:[#allocation7 + $0x40] sm:$0xff]
    %v207 = vld [vmem:[#allocation7 + $0x48] sm:$0xff]
    %v208 = vld [vmem:[#allocation7 + $0x50] sm:$0xff]
    %v209 = vld [vmem:[#allocation7 + $0x58] sm:$0xff]
    %v210 = vld [vmem:[#allocation7 + $0x60] sm:$0xff]
    %v211 = vld [vmem:[#allocation7 + $0x68] sm:$0xff]
    %v212 = vld [vmem:[#allocation7 + $0x70] sm:$0xff]
    %v213 = vld [vmem:[#allocation7 + $0x78] sm:$0xff]
    %v214 = vld [vmem:[%s4] sm:$0x1]
    %v216 = vlaneseq
    %v217 = vshrl.u32 %v216, 7
    %v218 = vsub.s32 0, %v217
    %v219 = vrot.slane %v214, %v218
    %221 = vmatprep.subr.mxu0 0.0
    %222 = vmatpush1.msra.mxu0 %v198
    %223 = vmatprep.subr.mxu0 0.0
    %224 = vmatpush1.msra.mxu0 %v199
    %225 = vmatprep.subr.mxu0 0.0
    %226 = vmatpush1.msra.mxu0 %v200
    %227 = vmatprep.subr.mxu0 0.0
    %228 = vmatpush1.msra.mxu0 %v201
    %229 = vmatprep.subr.mxu0 0.0
    %230 = vmatpush1.msra.mxu0 %v202
    %231 = vmatprep.subr.mxu0 0.0
    %232 = vmatpush1.msra.mxu0 %v203
    %233 = vmatprep.subr.mxu0 0.0
    %234 = vmatpush1.msra.mxu0 %v204
    %235 = vmatprep.subr.mxu0 0.0
    %236 = vmatpush1.msra.mxu0 %v205
    %237 = vmatprep.subr.mxu0 0.0
    %238 = vmatpush1.msra.mxu0 %v206
    %239 = vmatprep.subr.mxu0 0.0
    %240 = vmatpush1.msra.mxu0 %v207
    %241 = vmatprep.subr.mxu0 0.0
    %242 = vmatpush1.msra.mxu0 %v208
    %243 = vmatprep.subr.mxu0 0.0
    %244 = vmatpush1.msra.mxu0 %v209
    %245 = vmatprep.subr.mxu0 0.0
    %246 = vmatpush1.msra.mxu0 %v210
    %247 = vmatprep.subr.mxu0 0.0
    %248 = vmatpush1.msra.mxu0 %v211
    %249 = vmatprep.subr.mxu0 0.0
    %250 = vmatpush1.msra.mxu0 %v212
    %251 = vmatprep.subr.mxu0 0.0
    %252 = vmatpush1.msra.mxu0 %v213
    %253 = vmatprep.subr.mxu0 0.0
    %254 = vmatpush1.msra.mxu0 0.0
    %255 = vmatprep.subr.mxu0 0.0
    %256 = vmatpush1.msra.mxu0 0.0
    %257 = vmatprep.subr.mxu0 0.0
    %258 = vmatpush1.msra.mxu0 0.0
    %259 = vmatprep.subr.mxu0 0.0
    %260 = vmatpush1.msra.mxu0 0.0
    %261 = vmatprep.subr.mxu0 0.0
    %262 = vmatpush1.msra.mxu0 0.0
    %263 = vmatprep.subr.mxu0 0.0
    %264 = vmatpush1.msra.mxu0 0.0
    %265 = vmatprep.subr.mxu0 0.0
    %266 = vmatpush1.msra.mxu0 0.0
    %267 = vmatprep.subr.mxu0 0.0
    %268 = vmatpush1.msra.mxu0 0.0
    %269 = vmatprep.subr.mxu0 0.0
    %270 = vmatpush1.msra.mxu0 0.0
    %271 = vmatprep.subr.mxu0 0.0
    %272 = vmatpush1.msra.mxu0 0.0
    %273 = vmatprep.subr.mxu0 0.0
    %274 = vmatpush1.msra.mxu0 0.0
    %275 = vmatprep.subr.mxu0 0.0
    %276 = vmatpush1.msra.mxu0 0.0
    %277 = vmatprep.subr.mxu0 0.0
    %278 = vmatpush1.msra.mxu0 0.0
    %279 = vmatprep.subr.mxu0 0.0
    %280 = vmatpush1.msra.mxu0 0.0
    %281 = vmatprep.subr.mxu0 0.0
    %282 = vmatpush1.msra.mxu0 0.0
    %283 = vmatprep.subr.mxu0 0.0
    %284 = vmatpush1.msra.mxu0 0.0
    %285 = vmatprep.mubr.f32.mxu0 0.0
    %286 = vmatmul.mubr.f32.gmra.mrb[0].mxu0 %v197
    %v287 = vpop.f32.mrb[0].mxu0
    %v288 = vadd.f32 %v219, %v287
    %v289 = vpop.f32.mrb[0].mxu0
    %290 = vdwg.mxu0
    %v291 = vxor.u32 %v183, 198677718
    %v292 = vshrl.u32 %v291, 16
    %v293 = vxor.u32 %v291, %v292
    %v294 = vmul.u32 %v293, 2246822507
    %v295 = vshrl.u32 %v294, 13
    %v296 = vxor.u32 %v294, %v295
    %v297 = vmul.u32 %v296, 3266489909
    %v298 = vshrl.u32 %v297, 16
    %v299 = vxor.u32 %v297, %v298
    %v300 = vshrl.u32 %v299, 31
    %vm301 = vcmp.eq.s32.totalorder %v300, 0
    %vm302 = vcmp.gt.f32.partialorder %v288, 0.0
    %vm303 = vmand %vm301, %vm302
    %v304 = vsel %vm303, %v288, 0.0
    %v305 = vld [vmem:[#allocation8] sm:$0xff]
    %v306 = vld [vmem:[#allocation8 + $0x8] sm:$0xff]
    %v307 = vld [vmem:[#allocation8 + $0x10] sm:$0xff]
    %v308 = vld [vmem:[#allocation8 + $0x18] sm:$0xff]
    %v309 = vld [vmem:[#allocation8 + $0x20] sm:$0xff]
    %v310 = vld [vmem:[#allocation8 + $0x28] sm:$0xff]
    %v311 = vld [vmem:[#allocation8 + $0x30] sm:$0xff]
    %v312 = vld [vmem:[#allocation8 + $0x38] sm:$0xff]
    %v313 = vld [vmem:[#allocation8 + $0x40] sm:$0xff]
    %v314 = vld [vmem:[#allocation8 + $0x48] sm:$0xff]
    %v315 = vld [vmem:[#allocation8 + $0x50] sm:$0xff]
    %v316 = vld [vmem:[#allocation8 + $0x58] sm:$0xff]
    %v317 = vld [vmem:[#allocation8 + $0x60] sm:$0xff]
    %v318 = vld [vmem:[#allocation8 + $0x68] sm:$0xff]
    %v319 = vld [vmem:[#allocation8 + $0x70] sm:$0xff]
    %v320 = vld [vmem:[#allocation8 + $0x78] sm:$0xff]
    %v321 = vld [vmem:[%s6] sm:$0x1]
    %v323 = vlaneseq
    %v324 = vshrl.u32 %v323, 7
    %v325 = vsub.s32 0, %v324
    %v326 = vrot.slane %v321, %v325
    %328 = vmatprep.subr.mxu0 0.0
    %329 = vmatpush1.msra.mxu0 %v305
    %330 = vmatprep.subr.mxu0 0.0
    %331 = vmatpush1.msra.mxu0 %v306
    %332 = vmatprep.subr.mxu0 0.0
    %333 = vmatpush1.msra.mxu0 %v307
    %334 = vmatprep.subr.mxu0 0.0
    %335 = vmatpush1.msra.mxu0 %v308
    %336 = vmatprep.subr.mxu0 0.0
    %337 = vmatpush1.msra.mxu0 %v309
    %338 = vmatprep.subr.mxu0 0.0
    %339 = vmatpush1.msra.mxu0 %v310
    %340 = vmatprep.subr.mxu0 0.0
    %341 = vmatpush1.msra.mxu0 %v311
    %342 = vmatprep.subr.mxu0 0.0
    %343 = vmatpush1.msra.mxu0 %v312
    %344 = vmatprep.subr.mxu0 0.0
    %345 = vmatpush1.msra.mxu0 %v313
    %346 = vmatprep.subr.mxu0 0.0
    %347 = vmatpush1.msra.mxu0 %v314
    %348 = vmatprep.subr.mxu0 0.0
    %349 = vmatpush1.msra.mxu0 %v315
    %350 = vmatprep.subr.mxu0 0.0
    %351 = vmatpush1.msra.mxu0 %v316
    %352 = vmatprep.subr.mxu0 0.0
    %353 = vmatpush1.msra.mxu0 %v317
    %354 = vmatprep.subr.mxu0 0.0
    %355 = vmatpush1.msra.mxu0 %v318
    %356 = vmatprep.subr.mxu0 0.0
    %357 = vmatpush1.msra.mxu0 %v319
    %358 = vmatprep.subr.mxu0 0.0
    %359 = vmatpush1.msra.mxu0 %v320
    %360 = vmatprep.subr.mxu0 0.0
    %361 = vmatpush1.msra.mxu0 0.0
    %362 = vmatprep.subr.mxu0 0.0
    %363 = vmatpush1.msra.mxu0 0.0
    %364 = vmatprep.subr.mxu0 0.0
    %365 = vmatpush1.msra.mxu0 0.0
    %366 = vmatprep.subr.mxu0 0.0
    %367 = vmatpush1.msra.mxu0 0.0
    %368 = vmatprep.subr.mxu0 0.0
    %369 = vmatpush1.msra.mxu0 0.0
    %370 = vmatprep.subr.mxu0 0.0
    %371 = vmatpush1.msra.mxu0 0.0
    %372 = vmatprep.subr.mxu0 0.0
    %373 = vmatpush1.msra.mxu0 0.0
    %374 = vmatprep.subr.mxu0 0.0
    %375 = vmatpush1.msra.mxu0 0.0
    %376 = vmatprep.subr.mxu0 0.0
    %377 = vmatpush1.msra.mxu0 0.0
    %378 = vmatprep.subr.mxu0 0.0
    %379 = vmatpush1.msra.mxu0 0.0
    %380 = vmatprep.subr.mxu0 0.0
    %381 = vmatpush1.msra.mxu0 0.0
    %382 = vmatprep.subr.mxu0 0.0
    %383 = vmatpush1.msra.mxu0 0.0
    %384 = vmatprep.subr.mxu0 0.0
    %385 = vmatpush1.msra.mxu0 0.0
    %386 = vmatprep.subr.mxu0 0.0
    %387 = vmatpush1.msra.mxu0 0.0
    %388 = vmatprep.subr.mxu0 0.0
    %389 = vmatpush1.msra.mxu0 0.0
    %390 = vmatprep.subr.mxu0 0.0
    %391 = vmatpush1.msra.mxu0 0.0
    %392 = vmatprep.mubr.f32.mxu0 0.0
    %393 = vmatmul.mubr.f32.gmra.mrb[0].mxu0 %v304
    %v394 = vpop.f32.mrb[0].mxu0
    %v395 = vadd.f32 %v326, %v394
    %v396 = vpop.f32.mrb[0].mxu0
    %397 = vdwg.mxu0
    %398 = vst [vmem:[#allocation10] sm:$0xff] %v395
    // Predicated region
    $region46: #{tpu_custom_call.1} parent=1 // pred_check
      _
    $region47: #{tpu_custom_call.1} parent=1 // pred_check_branch
      %400 = sbr.rel (0) target = $region49
    $region48: #{tpu_custom_call.1} parent=1 // pred_region
      %s402 = ssub.s32 128, 128
      %403 = vsyncadd [#allocation4], %s402
      %s405 = sshll.u32 [#allocation10], 4
      %s406 = int_to_ptr.vmem [resolvable:$true] %s405
      %408 = dma.vmem_to_hbm [thread:$0]  %s406, 128, %s7, [#allocation4]
    $region49: #{tpu_custom_call.1} parent=1 // pred_fallthru
      _
    // Predicated region
    $region50: #{tpu_custom_call.1} parent=1 // pred_check
      _
    $region51: #{tpu_custom_call.1} parent=1 // pred_check_branch
      %410 = sbr.rel (0) target = $region53
    $region52: #{tpu_custom_call.1} parent=1 // pred_region
      %411 = dma.done [#allocation4], 128
    $region53: #{tpu_custom_call.1} parent=1 // pred_fallthru
      _
    %412 = vsyncpa [#allocation3], 1
    %413 = vsyncpa [#allocation6], 1
    %414 = vsyncpa [#allocation9], 1
    %415 = vsyncpa [#allocation4], 1

</llo_original>
